<compile_context>
chip_gen: v5e
topology: v5e:2x2
jax: 0.10.0
libtpu: 0.0.40
codegen_flags: <defaults>
</compile_context>

<pallas_src>
import numpy as np
import jax
import jax.numpy as jnp
from jax.experimental import pallas as pl
from jax.experimental.pallas import tpu as pltpu

# ----------------------------------------------------------------------------
# Small config consistent with the module
# ----------------------------------------------------------------------------
B = 2                          # batch
T = 8                          # sequence length (tokens)
HID = 32                       # hidden_size
PATCH = 2                      # patch_size
OUT_CH = 4                     # out_channels
OUT = PATCH * PATCH * OUT_CH   # linear output dim = 16


# ----------------------------------------------------------------------------
# Fused kernel: SiLU + adaLN linear + modulation + final linear, one invocation
# ----------------------------------------------------------------------------
def final_layer_kernel(x_ref, c_ref, w_shift_ref, b_shift_ref,
                       w_scale_ref, b_scale_ref, w_lin_ref, b_lin_ref, o_ref):
    # x:(B,T,H)  c:(B,H)  w_shift/w_scale:(H,H)  b_shift/b_scale:(1,H)
    # w_lin:(H,OUT)  b_lin:(1,OUT)  o:(B,T,OUT)
    c = c_ref[...]                                   # (B, H)
    silu_c = c * jax.nn.sigmoid(c)                   # SiLU (EUP path)

    # adaLN modulation for the whole batch in one pass (two tiny MXU matmuls).
    shift = jnp.dot(silu_c, w_shift_ref[...],
                    preferred_element_type=jnp.float32) + b_shift_ref[...]   # (B, H)
    scale1 = 1.0 + jnp.dot(silu_c, w_scale_ref[...],
                           preferred_element_type=jnp.float32) + b_scale_ref[...]  # (B, H)

    w_lin = w_lin_ref[...]                           # (H, OUT)
    b_lin = b_lin_ref[...]                           # (1, OUT)

    # Tiny batch: statically unrolled, keeps every op 2-D (no 3-D dot/reshape).
    for b in range(x_ref.shape[0]):
        xb = x_ref[b]                                # (T, H)
        mod = xb * scale1[b:b + 1, :] + shift[b:b + 1, :]     # broadcast FMA (VPU)
        y = jnp.dot(mod, w_lin,
                    preferred_element_type=jnp.float32) + b_lin               # (T, OUT)
        o_ref[b] = y.astype(o_ref.dtype)


# ----------------------------------------------------------------------------
# Wrapper
# ----------------------------------------------------------------------------
def final_layer(x, c, params):
    Bx, Tx, Hx = x.shape
    # One-time parameter layout prep (outside the kernel): split the fused
    # adaLN Linear(H, 2H) into its shift / scale halves.  Same math as
    # `.chunk(2, dim=1)` on the output.
    w_shift = params["w_ada"][:, :Hx]
    w_scale = params["w_ada"][:, Hx:]
    b_shift = params["b_ada"][:, :Hx]
    b_scale = params["b_ada"][:, Hx:]

    vmem = pl.BlockSpec(memory_space=pltpu.MemorySpace.VMEM)
    return pl.pallas_call(
        final_layer_kernel,
        out_shape=jax.ShapeDtypeStruct((Bx, Tx, OUT), jnp.float32),
        in_specs=[vmem] * 8,
        out_specs=vmem,
    )(x, c, w_shift, b_shift, w_scale, b_scale,
      params["w_lin"], params["b_lin"])


# ----------------------------------------------------------------------------
# Deterministic parameter init (shapes from __init__; right-mult matrices,
# i.e. the transpose of nn.Linear.weight — same math)
# ----------------------------------------------------------------------------
def init_params(key):
    ks = jax.random.split(key, 4)
    return {
        "w_ada": 0.02 * jax.random.normal(ks[0], (HID, 2 * HID), jnp.float32),
        "b_ada": 0.02 * jax.random.normal(ks[1], (1, 2 * HID), jnp.float32),
        "w_lin": 0.02 * jax.random.normal(ks[2], (HID, OUT), jnp.float32),
        "b_lin": 0.02 * jax.random.normal(ks[3], (1, OUT), jnp.float32),
    }


# ----------------------------------------------------------------------------
# Pure-JAX reference (same math as the PyTorch forward)
# ----------------------------------------------------------------------------
def reference_forward(x, c, params):
    silu_c = c * jax.nn.sigmoid(c)
    ada = silu_c @ params["w_ada"] + params["b_ada"]          # (B, 2H)
    shift, scale = ada[:, :HID], ada[:, HID:]
    xm = x * (1.0 + scale[:, None, :]) + shift[:, None, :]    # modulate
    return xm @ params["w_lin"] + params["b_lin"]             # (B, T, OUT)


if __name__ == "__main__":
    key = jax.random.PRNGKey(0)
    pkey, xkey, ckey = jax.random.split(key, 3)
    params = init_params(pkey)
    x = jax.random.normal(xkey, (B, T, HID), jnp.float32)
    c = jax.random.normal(ckey, (B, HID), jnp.float32)

    out = final_layer(x, c, params)
    out = jax.block_until_ready(out)

    ref = reference_forward(x, c, params)
    assert out.shape == (B, T, OUT)
    np.testing.assert_allclose(np.asarray(out), np.asarray(ref),
                               rtol=2e-4, atol=2e-4)
    print("KERNEL_OK")
</pallas_src>

<mosaic_0001>
module attributes {stable_mosaic.version = 11 : i64} {
  func.func @final_layer_kernel(%arg0: memref<2x8x32xf32, #tpu.memory_space<vmem>>, %arg1: memref<2x32xf32, #tpu.memory_space<vmem>>, %arg2: memref<32x32xf32, #tpu.memory_space<vmem>>, %arg3: memref<1x32xf32, #tpu.memory_space<vmem>>, %arg4: memref<32x32xf32, #tpu.memory_space<vmem>>, %arg5: memref<1x32xf32, #tpu.memory_space<vmem>>, %arg6: memref<32x16xf32, #tpu.memory_space<vmem>>, %arg7: memref<1x16xf32, #tpu.memory_space<vmem>>, %arg8: memref<2x8x16xf32, #tpu.memory_space<vmem>>) attributes {dimension_semantics = [], scalar_prefetch = 0 : i64, scratch_operands = 0 : i64, tpu.core_type = #tpu.core_type<tc>} {
    %c0 = arith.constant 0 : index
    %c0_0 = arith.constant 0 : index
    %0 = vector.load %arg1[%c0, %c0_0] : memref<2x32xf32, #tpu.memory_space<vmem>>, vector<2x32xf32>
    %1 = arith.negf %0 : vector<2x32xf32>
    %2 = math.exp %1 : vector<2x32xf32>
    %cst = arith.constant 1.000000e+00 : f32
    %3 = vector.broadcast %cst : f32 to vector<2x32xf32>
    %4 = arith.addf %3, %2 : vector<2x32xf32>
    %5 = arith.divf %3, %4 : vector<2x32xf32>
    %6 = arith.mulf %0, %5 : vector<2x32xf32>
    %c0_1 = arith.constant 0 : index
    %c0_2 = arith.constant 0 : index
    %7 = vector.load %arg2[%c0_1, %c0_2] : memref<32x32xf32, #tpu.memory_space<vmem>>, vector<32x32xf32>
    %cst_3 = arith.constant dense<0.000000e+00> : vector<2x32xf32>
    %8 = tpu.matmul %6, %7, %cst_3 {dimension_numbers = #tpu.dot_dimension_numbers<[1], [0], [0], [1], [0, 0, 1, 1], [], []>} : vector<2x32xf32>, vector<32x32xf32>, vector<2x32xf32> -> vector<2x32xf32>
    %c0_4 = arith.constant 0 : index
    %c0_5 = arith.constant 0 : index
    %9 = vector.load %arg3[%c0_4, %c0_5] : memref<1x32xf32, #tpu.memory_space<vmem>>, vector<1x32xf32>
    %10 = vector.broadcast %9 : vector<1x32xf32> to vector<2x32xf32>
    %11 = arith.addf %8, %10 : vector<2x32xf32>
    %c0_6 = arith.constant 0 : index
    %c0_7 = arith.constant 0 : index
    %12 = vector.load %arg4[%c0_6, %c0_7] : memref<32x32xf32, #tpu.memory_space<vmem>>, vector<32x32xf32>
    %cst_8 = arith.constant dense<0.000000e+00> : vector<2x32xf32>
    %13 = tpu.matmul %6, %12, %cst_8 {dimension_numbers = #tpu.dot_dimension_numbers<[1], [0], [0], [1], [0, 0, 1, 1], [], []>} : vector<2x32xf32>, vector<32x32xf32>, vector<2x32xf32> -> vector<2x32xf32>
    %cst_9 = arith.constant 1.000000e+00 : f32
    %14 = vector.broadcast %cst_9 : f32 to vector<2x32xf32>
    %15 = arith.addf %14, %13 : vector<2x32xf32>
    %c0_10 = arith.constant 0 : index
    %c0_11 = arith.constant 0 : index
    %16 = vector.load %arg5[%c0_10, %c0_11] : memref<1x32xf32, #tpu.memory_space<vmem>>, vector<1x32xf32>
    %17 = vector.broadcast %16 : vector<1x32xf32> to vector<2x32xf32>
    %18 = arith.addf %15, %17 : vector<2x32xf32>
    %c0_12 = arith.constant 0 : index
    %c0_13 = arith.constant 0 : index
    %19 = vector.load %arg6[%c0_12, %c0_13] : memref<32x16xf32, #tpu.memory_space<vmem>>, vector<32x16xf32>
    %c0_14 = arith.constant 0 : index
    %c0_15 = arith.constant 0 : index
    %20 = vector.load %arg7[%c0_14, %c0_15] : memref<1x16xf32, #tpu.memory_space<vmem>>, vector<1x16xf32>
    %c0_16 = arith.constant 0 : index
    %c0_17 = arith.constant 0 : index
    %c0_18 = arith.constant 0 : index
    %21 = vector.load %arg0[%c0_16, %c0_17, %c0_18] : memref<2x8x32xf32, #tpu.memory_space<vmem>>, vector<1x8x32xf32>
    %22 = vector.shape_cast %21 : vector<1x8x32xf32> to vector<8x32xf32>
    %23 = vector.extract_strided_slice %18 {offsets = [0, 0], sizes = [1, 32], strides = [1, 1]} : vector<2x32xf32> to vector<1x32xf32>
    %24 = vector.broadcast %23 : vector<1x32xf32> to vector<8x32xf32>
    %25 = arith.mulf %22, %24 : vector<8x32xf32>
    %26 = vector.extract_strided_slice %11 {offsets = [0, 0], sizes = [1, 32], strides = [1, 1]} : vector<2x32xf32> to vector<1x32xf32>
    %27 = vector.broadcast %26 : vector<1x32xf32> to vector<8x32xf32>
    %28 = arith.addf %25, %27 : vector<8x32xf32>
    %cst_19 = arith.constant dense<0.000000e+00> : vector<8x16xf32>
    %29 = tpu.matmul %28, %19, %cst_19 {dimension_numbers = #tpu.dot_dimension_numbers<[1], [0], [0], [1], [0, 0, 1, 1], [], []>} : vector<8x32xf32>, vector<32x16xf32>, vector<8x16xf32> -> vector<8x16xf32>
    %30 = vector.broadcast %20 : vector<1x16xf32> to vector<8x16xf32>
    %31 = arith.addf %29, %30 : vector<8x16xf32>
    %c0_20 = arith.constant 0 : index
    %c0_21 = arith.constant 0 : index
    %c0_22 = arith.constant 0 : index
    %32 = vector.load %arg8[%c0_20, %c0_21, %c0_22] : memref<2x8x16xf32, #tpu.memory_space<vmem>>, vector<1x8x16xf32>
    %33 = vector.shape_cast %32 : vector<1x8x16xf32> to vector<8x16xf32>
    %34 = vector.shape_cast %31 : vector<8x16xf32> to vector<1x8x16xf32>
    tpu.vector_store %arg8[%c0_20, %c0_21, %c0_22], %34 {strides = array<i32>} : memref<2x8x16xf32, #tpu.memory_space<vmem>>, vector<1x8x16xf32>,
    %c1 = arith.constant 1 : index
    %c0_23 = arith.constant 0 : index
    %c0_24 = arith.constant 0 : index
    %35 = vector.load %arg0[%c1, %c0_23, %c0_24] : memref<2x8x32xf32, #tpu.memory_space<vmem>>, vector<1x8x32xf32>
    %36 = vector.shape_cast %35 : vector<1x8x32xf32> to vector<8x32xf32>
    %37 = vector.extract_strided_slice %18 {offsets = [1, 0], sizes = [1, 32], strides = [1, 1]} : vector<2x32xf32> to vector<1x32xf32>
    %38 = vector.broadcast %37 : vector<1x32xf32> to vector<8x32xf32>
    %39 = arith.mulf %36, %38 : vector<8x32xf32>
    %40 = vector.extract_strided_slice %11 {offsets = [1, 0], sizes = [1, 32], strides = [1, 1]} : vector<2x32xf32> to vector<1x32xf32>
    %41 = vector.broadcast %40 : vector<1x32xf32> to vector<8x32xf32>
    %42 = arith.addf %39, %41 : vector<8x32xf32>
    %cst_25 = arith.constant dense<0.000000e+00> : vector<8x16xf32>
    %43 = tpu.matmul %42, %19, %cst_25 {dimension_numbers = #tpu.dot_dimension_numbers<[1], [0], [0], [1], [0, 0, 1, 1], [], []>} : vector<8x32xf32>, vector<32x16xf32>, vector<8x16xf32> -> vector<8x16xf32>
    %44 = vector.broadcast %20 : vector<1x16xf32> to vector<8x16xf32>
    %45 = arith.addf %43, %44 : vector<8x16xf32>
    %c1_26 = arith.constant 1 : index
    %c0_27 = arith.constant 0 : index
    %c0_28 = arith.constant 0 : index
    %46 = vector.load %arg8[%c1_26, %c0_27, %c0_28] : memref<2x8x16xf32, #tpu.memory_space<vmem>>, vector<1x8x16xf32>
    %47 = vector.shape_cast %46 : vector<1x8x16xf32> to vector<8x16xf32>
    %48 = vector.shape_cast %45 : vector<8x16xf32> to vector<1x8x16xf32>
    tpu.vector_store %arg8[%c1_26, %c0_27, %c0_28], %48 {strides = array<i32>} : memref<2x8x16xf32, #tpu.memory_space<vmem>>, vector<1x8x16xf32>,
    return
  }
}

</mosaic_0001>

<llo_original>
// kernel: tpu_custom_call.1
$region0: #{tpu_custom_call.1}
  #allocation0 [shape = 'u32[]', space=smem, size = 0x4, offset = 0x4, fixed_abs, tag = 'smem constant byte address 0x4 - core index']
  #allocation1 [shape = 'u32[72,128]{1,0:T(1,128)}', space=vmem, size = 0x9000, scoped, tag = 'internal scratch']
  %s0 = inlined_call_operand.vmem [shape: f32[2,8,32], index: 0, kind: input, shape index: {}]
  %s1 = inlined_call_operand.hbm [shape: f32[2,32], index: 1, kind: input, shape index: {}]
  %s2 = inlined_call_operand.vmem [shape: f32[32,32], index: 2, kind: input, shape index: {}]
  %s3 = inlined_call_operand.vmem [shape: f32[1,32], index: 3, kind: input, shape index: {}]
  %s4 = inlined_call_operand.hbm [shape: f32[32,32], index: 4, kind: input, shape index: {}]
  %s5 = inlined_call_operand.vmem [shape: f32[1,32], index: 5, kind: input, shape index: {}]
  %s6 = inlined_call_operand.vmem [shape: f32[32,16], index: 6, kind: input, shape index: {}]
  %s7 = inlined_call_operand.vmem [shape: f32[1,16], index: 7, kind: input, shape index: {}]
  %s8 = inlined_call_operand.hbm [shape: f32[2,8,16], index: 8, kind: output, shape index: {}]
  %s9 = sld [smem:[#allocation0]]
  $region50: #{tpu_custom_call.1} parent=0
    _
  %s11 = ssub.s32 1, %s9
  %s12 = scalar_select 0, %s11, %s9
  $region1: #{tpu_custom_call.1} parent=0
    #allocation2 [shape = 'u8[1024]{0}', space=vmem, size = 0x400, scoped, tag = 'input window, operand 1, single buffered']
    #allocation3 [shape = 's32[1]{0}', space=sflag, size = 0x4, scoped, tag = 'scoped memory for tpu_custom_call.1']
    #allocation4 [shape = 's32[1]{0}', space=sflag, size = 0x4, scoped, tag = 'scoped memory for tpu_custom_call.1']
    #allocation5 [shape = 'u8[16384]{0}', space=vmem, size = 0x4000, scoped, tag = 'input window, operand 4, single buffered']
    #allocation6 [shape = 's32[1]{0}', space=sflag, size = 0x4, scoped, tag = 'scoped memory for tpu_custom_call.1']
    #allocation7 [shape = 'u8[8192]{0}', space=vmem, size = 0x2000, scoped, tag = 'output window, operand 0, single buffered']
    %13 = vsyncpa [#allocation3], 0
    %14 = vsyncpa [#allocation6], 0
    %15 = vsyncpa [#allocation4], 0
    // Predicated region
    $region2: #{tpu_custom_call.1} parent=1 // pred_check
      _
    $region3: #{tpu_custom_call.1} parent=1 // pred_check_branch
      %17 = sbr.rel (0) target = $region5
    $region4: #{tpu_custom_call.1} parent=1 // pred_region
      _
    $region5: #{tpu_custom_call.1} parent=1 // pred_fallthru
      _
    // Predicated region
    $region6: #{tpu_custom_call.1} parent=1 // pred_check
      _
    $region7: #{tpu_custom_call.1} parent=1 // pred_check_branch
      %19 = sbr.rel (0) target = $region9
    $region8: #{tpu_custom_call.1} parent=1 // pred_region
      %21 = vsyncadd [#allocation3], 0
      %s23 = sshll.u32 %s1, 4
      %s24 = int_to_ptr.hbm [resolvable:$true] %s23
      %s25 = sshll.u32 [#allocation2], 4
      %s26 = int_to_ptr.vmem [resolvable:$true] %s25
      %28 = dma.hbm_to_vmem [thread:$0]  %s24, 32, %s26, [#allocation3]
    $region9: #{tpu_custom_call.1} parent=1 // pred_fallthru
      _
    // Predicated region
    $region10: #{tpu_custom_call.1} parent=1 // pred_check
      _
    $region11: #{tpu_custom_call.1} parent=1 // pred_check_branch
      %30 = sbr.rel (0) target = $region13
    $region12: #{tpu_custom_call.1} parent=1 // pred_region
      _
    $region13: #{tpu_custom_call.1} parent=1 // pred_fallthru
      _
    // Predicated region
    $region14: #{tpu_custom_call.1} parent=1 // pred_check
      _
    $region15: #{tpu_custom_call.1} parent=1 // pred_check_branch
      %32 = sbr.rel (0) target = $region17
    $region16: #{tpu_custom_call.1} parent=1 // pred_region
      _
    $region17: #{tpu_custom_call.1} parent=1 // pred_fallthru
      _
    // Predicated region
    $region18: #{tpu_custom_call.1} parent=1 // pred_check
      _
    $region19: #{tpu_custom_call.1} parent=1 // pred_check_branch
      %34 = sbr.rel (0) target = $region21
    $region20: #{tpu_custom_call.1} parent=1 // pred_region
      %36 = vsyncadd [#allocation6], 0
      %s37 = sshll.u32 %s4, 4
      %s38 = int_to_ptr.hbm [resolvable:$true] %s37
      %s39 = sshll.u32 [#allocation5], 4
      %s40 = int_to_ptr.vmem [resolvable:$true] %s39
      %45 = dma.hbm_to_vmem [thread:$0]  %s38, 512, %s40, [#allocation6], 128, 128, 8
    $region21: #{tpu_custom_call.1} parent=1 // pred_fallthru
      _
    // Predicated region
    $region22: #{tpu_custom_call.1} parent=1 // pred_check
      _
    $region23: #{tpu_custom_call.1} parent=1 // pred_check_branch
      %47 = sbr.rel (0) target = $region25
    $region24: #{tpu_custom_call.1} parent=1 // pred_region
      _
    $region25: #{tpu_custom_call.1} parent=1 // pred_fallthru
      _
    // Predicated region
    $region26: #{tpu_custom_call.1} parent=1 // pred_check
      _
    $region27: #{tpu_custom_call.1} parent=1 // pred_check_branch
      %49 = sbr.rel (0) target = $region29
    $region28: #{tpu_custom_call.1} parent=1 // pred_region
      _
    $region29: #{tpu_custom_call.1} parent=1 // pred_fallthru
      _
    // Predicated region
    $region30: #{tpu_custom_call.1} parent=1 // pred_check
      _
    $region31: #{tpu_custom_call.1} parent=1 // pred_check_branch
      %51 = sbr.rel (0) target = $region33
    $region32: #{tpu_custom_call.1} parent=1 // pred_region
      _
    $region33: #{tpu_custom_call.1} parent=1 // pred_fallthru
      _
    // Predicated region
    $region34: #{tpu_custom_call.1} parent=1 // pred_check
      _
    $region35: #{tpu_custom_call.1} parent=1 // pred_check_branch
      %53 = sbr.rel (0) target = $region37
    $region36: #{tpu_custom_call.1} parent=1 // pred_region
      %55 = dma.done [#allocation3], 32
    $region37: #{tpu_custom_call.1} parent=1 // pred_fallthru
      _
    // Predicated region
    $region38: #{tpu_custom_call.1} parent=1 // pred_check
      _
    $region39: #{tpu_custom_call.1} parent=1 // pred_check_branch
      %57 = sbr.rel (0) target = $region41
    $region40: #{tpu_custom_call.1} parent=1 // pred_region
      %59 = dma.done [#allocation6], 512
    $region41: #{tpu_custom_call.1} parent=1 // pred_fallthru
      _
    %v60 = vld [vmem:[#allocation2] sm:$0x3]
    %v61 = vxor.u32 %v60, 2147483648
    %v62 = vmul.f32 %v61, 1.442695
    %v63 = vpow.pop %v62
    %v64 = vadd.f32 %v63, 1.0
    %v65 = vrcp.pop %v64
    %v66 = vmul.f32 %v64, %v65
    %v67 = vsub.f32 1.0, %v66
    %v68 = vmul.f32 %v65, %v67
    %v69 = vadd.f32 %v65, %v68
    %vm70 = vweird.f32 %v64
    %vm71 = vweird.f32 %v65
    %vm72 = vmor %vm70, %vm71
    %v73 = vsel %vm72, %v65, %v69
    %v74 = vand.u32 2147483647, %v64
    %vm75 = vcmp.eq.f32.partialorder %v74, 8.507059e+37
    %v76 = vand.u32 %v64, 2147483648
    %v77 = vor.u32 1.1754944e-38, %v76
    %v78 = vsel %vm75, %v77, %v73
    %v79 = vmul.f32 1.0, %v78
    %v80 = vmul.f32 %v60, %v79
    %v81 = vld [vmem:[%s2] sm:$0xff]
    %v82 = vld [vmem:[%s2 + $0x8] sm:$0xff]
    %v83 = vld [vmem:[%s2 + $0x10] sm:$0xff]
    %v84 = vld [vmem:[%s2 + $0x18] sm:$0xff]
    %v85 = vld [vmem:[%s3] sm:$0x1]
    %v87 = vperm.slane %v85, 0
    %vm89 = vcmask 261120
    %v91 = vsel %vm89, %v80, 0
    %93 = vmatpush.msra.mxu0 0.0
    %94 = vmatpush.msra.mxu0 0.0
    %95 = vmatpush.msra.mxu0 0.0
    %96 = vmatpush.msra.mxu0 0.0
    %97 = vmatpush.msra.mxu0 0.0
    %98 = vmatpush.msra.mxu0 0.0
    %99 = vmatpush.msra.mxu0 0.0
    %100 = vmatpush.msra.mxu0 0.0
    %101 = vmatpush.msra.mxu0 0.0
    %102 = vmatpush.msra.mxu0 0.0
    %103 = vmatpush.msra.mxu0 0.0
    %104 = vmatpush.msra.mxu0 0.0
    %105 = vmatpush.msra.mxu0 %v84
    %106 = vmatpush.msra.mxu0 %v83
    %107 = vmatpush.msra.mxu0 %v82
    %108 = vmatpush.msra.mxu0 %v81
    %109 = vmatmul.f32.gmra.mxu0 %v91
    %v110 = vpop.f32.mrf.mxu0
    %v111 = vadd.f32 %v87, %v110
    %112 = vdwg.mxu0
    %v113 = vld [vmem:[#allocation5] sm:$0xff]
    %v114 = vld [vmem:[#allocation5 + $0x8] sm:$0xff]
    %v115 = vld [vmem:[#allocation5 + $0x10] sm:$0xff]
    %v116 = vld [vmem:[#allocation5 + $0x18] sm:$0xff]
    %117 = vmatpush.msra.mxu0 0.0
    %118 = vmatpush.msra.mxu0 0.0
    %119 = vmatpush.msra.mxu0 0.0
    %120 = vmatpush.msra.mxu0 0.0
    %121 = vmatpush.msra.mxu0 0.0
    %122 = vmatpush.msra.mxu0 0.0
    %123 = vmatpush.msra.mxu0 0.0
    %124 = vmatpush.msra.mxu0 0.0
    %125 = vmatpush.msra.mxu0 0.0
    %126 = vmatpush.msra.mxu0 0.0
    %127 = vmatpush.msra.mxu0 0.0
    %128 = vmatpush.msra.mxu0 0.0
    %129 = vmatpush.msra.mxu0 %v116
    %130 = vmatpush.msra.mxu0 %v115
    %131 = vmatpush.msra.mxu0 %v114
    %132 = vmatpush.msra.mxu0 %v113
    %133 = vmatmul.f32.gmra.mxu0 %v91
    %v134 = vpop.f32.mrf.mxu0
    %v135 = vadd.f32 1.0, %v134
    %136 = vdwg.mxu0
    %v137 = vld [vmem:[%s5] sm:$0x1]
    %v139 = vperm.slane %v137, 0
    %v141 = vadd.f32 %v135, %v139
    %v142 = vld [vmem:[%s6] sm:$0xff]
    %v143 = vld [vmem:[%s6 + $0x8] sm:$0xff]
    %v144 = vld [vmem:[%s6 + $0x10] sm:$0xff]
    %v145 = vld [vmem:[%s6 + $0x18] sm:$0xff]
    %v146 = vld [vmem:[%s7] sm:$0x1]
    %v147 = vld [vmem:[%s0] sm:$0xff]
    %v148 = vperm.slane %v141, 0
    %v149 = vmul.f32 %v147, %v148
    %v150 = vperm.slane %v111, 0
    %v151 = vadd.f32 %v149, %v150
    %v153 = vperm.slane %v146, 0
    %v156 = vsel %vm89, %v151, 0
    %158 = vmatpush.msra.mxu0 0.0
    %159 = vmatpush.msra.mxu0 0.0
    %160 = vmatpush.msra.mxu0 0.0
    %161 = vmatpush.msra.mxu0 0.0
    %162 = vmatpush.msra.mxu0 0.0
    %163 = vmatpush.msra.mxu0 0.0
    %164 = vmatpush.msra.mxu0 0.0
    %165 = vmatpush.msra.mxu0 0.0
    %166 = vmatpush.msra.mxu0 0.0
    %167 = vmatpush.msra.mxu0 0.0
    %168 = vmatpush.msra.mxu0 0.0
    %169 = vmatpush.msra.mxu0 0.0
    %170 = vmatpush.msra.mxu0 %v145
    %171 = vmatpush.msra.mxu0 %v144
    %172 = vmatpush.msra.mxu0 %v143
    %173 = vmatpush.msra.mxu0 %v142
    %174 = vmatmul.f32.gmra.mxu0 %v156
    %v175 = vpop.f32.mrf.mxu0
    %v176 = vadd.f32 %v153, %v175
    %177 = vdwg.mxu0
    %vm178 = vcmask 130048
    %179 = vst.msk [vmem:[#allocation7] sm:$0xff] %vm178, %v176
    %s180 = scalar_lea.vmem %s0, 8
    %v181 = vld [vmem:[%s180] sm:$0xff]
    %v182 = vperm.slane %v141, 1
    %v183 = vmul.f32 %v181, %v182
    %v184 = vperm.slane %v111, 1
    %v185 = vadd.f32 %v183, %v184
    %v187 = vsel %vm89, %v185, 0
    %189 = vmatpush.msra.mxu0 0.0
    %190 = vmatpush.msra.mxu0 0.0
    %191 = vmatpush.msra.mxu0 0.0
    %192 = vmatpush.msra.mxu0 0.0
    %193 = vmatpush.msra.mxu0 0.0
    %194 = vmatpush.msra.mxu0 0.0
    %195 = vmatpush.msra.mxu0 0.0
    %196 = vmatpush.msra.mxu0 0.0
    %197 = vmatpush.msra.mxu0 0.0
    %198 = vmatpush.msra.mxu0 0.0
    %199 = vmatpush.msra.mxu0 0.0
    %200 = vmatpush.msra.mxu0 0.0
    %201 = vmatpush.msra.mxu0 %v145
    %202 = vmatpush.msra.mxu0 %v144
    %203 = vmatpush.msra.mxu0 %v143
    %204 = vmatpush.msra.mxu0 %v142
    %205 = vmatmul.f32.gmra.mxu0 %v187
    %v206 = vpop.f32.mrf.mxu0
    %v207 = vadd.f32 %v153, %v206
    %208 = vdwg.mxu0
    %s209 = scalar_lea.vmem [#allocation7], 8
    %210 = vst.msk [vmem:[%s209] sm:$0xff] %vm178, %v207
    // Predicated region
    $region42: #{tpu_custom_call.1} parent=1 // pred_check
      _
    $region43: #{tpu_custom_call.1} parent=1 // pred_check_branch
      %212 = sbr.rel (0) target = $region45
    $region44: #{tpu_custom_call.1} parent=1 // pred_region
      %214 = vsyncadd [#allocation4], 0
      %s215 = sshll.u32 [#allocation7], 4
      %s216 = int_to_ptr.vmem [resolvable:$true] %s215
      %s217 = sshll.u32 %s8, 4
      %s218 = int_to_ptr.hbm [resolvable:$true] %s217
      %223 = dma.vmem_to_hbm [thread:$0]  %s216, 256, %s218, [#allocation4], 128, 128, 8
    $region45: #{tpu_custom_call.1} parent=1 // pred_fallthru
      _
    // Predicated region
    $region46: #{tpu_custom_call.1} parent=1 // pred_check
      _
    $region47: #{tpu_custom_call.1} parent=1 // pred_check_branch
      %225 = sbr.rel (0) target = $region49
    $region48: #{tpu_custom_call.1} parent=1 // pred_region
      %227 = dma.done [#allocation4], 256
    $region49: #{tpu_custom_call.1} parent=1 // pred_fallthru
      _
    %228 = vsyncpa [#allocation3], 1
    %229 = vsyncpa [#allocation6], 1
    %230 = vsyncpa [#allocation4], 1

</llo_original>
